<compile_context>
chip_gen: v7x
topology: tpu7x:2x2x1
jax: 0.10.0
libtpu: 0.0.40
codegen_flags: <defaults>
</compile_context>

<pallas_src>
import functools
import math

import jax
import jax.numpy as jnp
from jax.experimental import pallas as pl
from jax.experimental.pallas import tpu as pltpu

_LANES = 128
_ACC_ROWS = 8                             # vreg-shaped (8, 128) accumulator
_CHUNK = _ACC_ROWS * _LANES               # kernel consumes multiples of 1024 elems
_TARGET_BLOCK_BYTES = 2 * 1024 * 1024     # ~2 MiB per input block per grid step
_VMEM_LIMIT_BYTES = 32 * 1024 * 1024      # safe on v5e/v6e (128 MiB) and v7x (64 MiB/TC)
_EPS = 1e-10
_APPROX_RECIP = True                      # EUP reciprocal for the MRAE denominator


def _tensorcore_split():
    """Returns (cores to split the reduction over, semantics for the core axis)."""
    try:
        kind = jax.devices()[0].device_kind.lower()
    except Exception:  # pragma: no cover - be conservative if introspection fails
        return 1, pltpu.ARBITRARY
    if "lite" in kind or "v5e" in kind or "v6" in kind:
        return 1, pltpu.ARBITRARY          # single-TC chips: skip the split entirely
    if "v7" in kind or "7x" in kind:
        return 2, pltpu.CORE_PARALLEL      # dual-TC v7x: explicit core-parallel split
    if "v4" in kind or "v5" in kind:
        return 2, pltpu.PARALLEL           # v4 / v5p megacore: parallel shards grid
    return 1, pltpu.ARBITRARY


def _loss_kernel(pred_ref, lab_ref, acc_ref, *, block_rows, steps_per_core,
                 num_blocks, rows, use_label_denom, mask_last_block,
                 has_dup_blocks):
    """Accumulates the per-element error sum into a resident (8,128) output block."""
    c = pl.program_id(0)                  # core-split axis (size 1 on single-TC)
    i = pl.program_id(1)                  # reduction steps for this core
    blk = c * steps_per_core + i          # logical (unclamped) block index

    @pl.when(i == 0)
    def _():
        acc_ref[...] = jnp.zeros_like(acc_ref)

    def _accumulate():
        p = pred_ref[...].astype(jnp.float32)
        l = lab_ref[...].astype(jnp.float32)
        diff = jnp.abs(p - l)
        if use_label_denom:
            # EUP reciprocal (approx) keeps the divide off the VALU slots.
            err = diff * pl.reciprocal(l + _EPS, approx=_APPROX_RECIP)
        else:
            err = diff                     # plain MAE (rgb_mrae_loss)

        def _add(e):
            # Fold rows onto the vreg-shaped accumulator: pure VPU adds, no XLU.
            acc_ref[...] += e.reshape(-1, _ACC_ROWS, _LANES).sum(axis=0)

        if mask_last_block:
            @pl.when(blk == num_blocks - 1)
            def _():
                # Row mask only on the single partial edge block (interior blocks
                # never pay for it).  Row-index compare -> no int32 overflow.
                r = jax.lax.broadcasted_iota(jnp.int32, (block_rows, _LANES), 0)
                valid = blk * block_rows + r < rows
                _add(jnp.where(valid, err, 0.0))

            @pl.when(blk != num_blocks - 1)
            def _():
                _add(err)
        else:
            _add(err)

    if has_dup_blocks:
        # Clamped duplicate blocks from the core-split overshoot skip all work.
        pl.when(blk < num_blocks)(_accumulate)
    else:
        _accumulate()


def _wrapper_error_sum(o, l, use_label_denom):
    d = jnp.abs(o.astype(jnp.float32) - l.astype(jnp.float32))
    if use_label_denom:
        d = d / (l.astype(jnp.float32) + _EPS)
    return jnp.sum(d)


def _mean_error(outputs, label, *, use_label_denom):
    assert outputs.shape == label.shape, (outputs.shape, label.shape)
    n = int(math.prod(outputs.shape))

    o_flat = jnp.ravel(outputs)            # native dtype; cast in-kernel
    l_flat = jnp.ravel(label)

    aligned = (n // _CHUNK) * _CHUNK
    tail = n - aligned

    tail_sum = jnp.float32(0.0)
    if tail:
        # Ragged tail (< 1024 elements) handled with plain XLA ops instead of
        # jnp.pad-ing (re-materialising) both full arrays in HBM.
        tail_sum = _wrapper_error_sum(o_flat[aligned:], l_flat[aligned:],
                                      use_label_denom)

    if aligned == 0:
        return tail_sum / jnp.float32(n)

    rows = aligned // _LANES               # multiple of _ACC_ROWS by construction
    o2 = (o_flat[:aligned] if tail else o_flat).reshape(rows, _LANES)
    l2 = (l_flat[:aligned] if tail else l_flat).reshape(rows, _LANES)

    # dtype-aware row tile: ~2 MiB per input block regardless of element size.
    itemsize = max(outputs.dtype.itemsize, label.dtype.itemsize)
    cap = max(_ACC_ROWS,
              (_TARGET_BLOCK_BYTES // (_LANES * itemsize)) // _ACC_ROWS * _ACC_ROWS)
    block_rows = min(cap, rows)
    num_blocks = (rows + block_rows - 1) // block_rows

    max_cores, core_sem = _tensorcore_split()
    n_cores = max_cores if num_blocks >= max_cores else 1
    steps_per_core = (num_blocks + n_cores - 1) // n_cores
    has_dup_blocks = steps_per_core * n_cores != num_blocks
    mask_last_block = (rows % block_rows) != 0

    def block_map(c, i):
        # Clamp so duplicate (skipped) blocks never issue an OOB block DMA.
        return (jnp.minimum(c * steps_per_core + i, num_blocks - 1), 0)

    kernel = functools.partial(
        _loss_kernel,
        block_rows=block_rows,
        steps_per_core=steps_per_core,
        num_blocks=num_blocks,
        rows=rows,
        use_label_denom=use_label_denom,
        mask_last_block=mask_last_block,
        has_dup_blocks=has_dup_blocks,
    )

    dim_sem = (core_sem if n_cores > 1 else pltpu.ARBITRARY, pltpu.ARBITRARY)

    partials = pl.pallas_call(
        kernel,
        out_shape=jax.ShapeDtypeStruct((n_cores * _ACC_ROWS, _LANES), jnp.float32),
        grid_spec=pltpu.PrefetchScalarGridSpec(
            num_scalar_prefetch=0,
            grid=(n_cores, steps_per_core),
            in_specs=[
                pl.BlockSpec((block_rows, _LANES), block_map),
                pl.BlockSpec((block_rows, _LANES), block_map),
            ],
            out_specs=pl.BlockSpec((_ACC_ROWS, _LANES), lambda c, i: (c, 0)),
        ),
        compiler_params=pltpu.CompilerParams(
            dimension_semantics=dim_sem,
            vmem_limit_bytes=_VMEM_LIMIT_BYTES,
        ),
    )(o2, l2)

    # Tiny final cross-lane reduce (n_cores*8 x 128) + mean in plain XLA.
    # NOTE: single running f32 accumulator per lane position — adequate for a
    # training loss; a chunked second-level sum is a cheap upgrade if tighter
    # agreement with the PyTorch reference is ever required.
    return (jnp.sum(partials) + tail_sum) / jnp.float32(n)


def mrae_loss(outputs, label):
    """LossTrainCSS.forward: mean(|outputs - label| / (label + 1e-10))."""
    return _mean_error(outputs, label, use_label_denom=True)


def rgb_mrae_loss(outputs, label):
    """LossTrainCSS.rgb_mrae_loss: mean(|outputs - label|)."""
    return _mean_error(outputs, label, use_label_denom=False)


if __name__ == "__main__":
    key = jax.random.PRNGKey(0)
    k1, k2, k3, k4 = jax.random.split(key, 4)

    # Canonical small NCHW output/label pair (batch=2, channels=4, 16x16).
    outputs = jax.random.uniform(k1, (2, 4, 16, 16), dtype=jnp.float32) + 0.1
    label = jax.random.uniform(k2, (2, 4, 16, 16), dtype=jnp.float32) + 0.1

    mrae = jax.block_until_ready(mrae_loss(outputs, label))
    ref = jnp.mean(jnp.abs(outputs - label) / (label + 1e-10))
    # Loose rtol: the approx EUP reciprocal carries ~1e-4 relative error.
    assert jnp.allclose(mrae, ref, rtol=1e-2, atol=1e-6), (mrae, ref)

    rgb = jax.block_until_ready(rgb_mrae_loss(outputs, label))
    ref_rgb = jnp.mean(jnp.abs(outputs - label))
    assert jnp.allclose(rgb, ref_rgb, rtol=1e-5, atol=1e-7), (rgb, ref_rgb)

    # Unaligned flat length -> exercises the wrapper-side tail path (no pads).
    o3 = jax.random.uniform(k3, (3, 5, 7, 11), dtype=jnp.float32) + 0.1
    l3 = jax.random.uniform(k4, (3, 5, 7, 11), dtype=jnp.float32) + 0.1
    m3 = jax.block_until_ready(mrae_loss(o3, l3))
    r3 = jnp.mean(jnp.abs(o3 - l3) / (l3 + 1e-10))
    assert jnp.allclose(m3, r3, rtol=1e-2, atol=1e-6), (m3, r3)

    # Multi-block case exercising the gated last-block row mask + tail.
    o4 = jax.random.uniform(k1, (2, 31, 100, 100), dtype=jnp.float32) + 0.1
    l4 = jax.random.uniform(k2, (2, 31, 100, 100), dtype=jnp.float32) + 0.1
    m4 = jax.block_until_ready(mrae_loss(o4, l4))
    r4 = jnp.mean(jnp.abs(o4 - l4) / (l4 + 1e-10))
    assert jnp.allclose(m4, r4, rtol=1e-2, atol=1e-6), (m4, r4)

    print("KERNEL_OK")
</pallas_src>

<mosaic_0001>
module attributes {stable_mosaic.version = 11 : i64} {
  func.func @_loss_kernel(%arg0: i32, %arg1: i32, %arg2: memref<16x128xf32, #tpu.memory_space<vmem>>, %arg3: memref<16x128xf32, #tpu.memory_space<vmem>>, %arg4: memref<8x128xf32, #tpu.memory_space<vmem>>) attributes {dimension_semantics = [#tpu.dimension_semantics<arbitrary>, #tpu.dimension_semantics<arbitrary>], iteration_bounds = array<i64: 1, 1>, scalar_prefetch = 0 : i64, scratch_operands = 0 : i64, tpu.core_type = #tpu.core_type<tc>, window_params = [{transform_indices = @transform_0, window_bounds = array<i64: 16, 128>}, {transform_indices = @transform_1, window_bounds = array<i64: 16, 128>}, {transform_indices = @transform_2, window_bounds = array<i64: 8, 128>}]} {
    %c0_i32 = arith.constant 0 : i32
    %0 = arith.cmpi eq, %arg1, %c0_i32 : i32
    %1 = arith.extui %0 : i1 to i32
    %c0_i32_0 = arith.constant 0 : i32
    %2 = arith.cmpi ne, %1, %c0_i32_0 : i32
    scf.if %2 {
      %cst_9 = arith.constant 0.000000e+00 : f32
      %16 = vector.broadcast %cst_9 : f32 to vector<8x128xf32>
      %c0_10 = arith.constant 0 : index
      %c0_11 = arith.constant 0 : index
      %17 = vector.load %arg4[%c0_10, %c0_11] : memref<8x128xf32, #tpu.memory_space<vmem>>, vector<8x128xf32>
      tpu.vector_store %arg4[%c0_10, %c0_11], %16 {strides = array<i32>} : memref<8x128xf32, #tpu.memory_space<vmem>>, vector<8x128xf32>,
    } else {
    }
    %c0 = arith.constant 0 : index
    %c0_1 = arith.constant 0 : index
    %3 = vector.load %arg2[%c0, %c0_1] : memref<16x128xf32, #tpu.memory_space<vmem>>, vector<16x128xf32>
    %c0_2 = arith.constant 0 : index
    %c0_3 = arith.constant 0 : index
    %4 = vector.load %arg3[%c0_2, %c0_3] : memref<16x128xf32, #tpu.memory_space<vmem>>, vector<16x128xf32>
    %5 = arith.subf %3, %4 : vector<16x128xf32>
    %6 = math.absf %5 : vector<16x128xf32>
    %cst = arith.constant 1.000000e-10 : f32
    %7 = vector.broadcast %cst : f32 to vector<16x128xf32>
    %8 = arith.addf %4, %7 : vector<16x128xf32>
    %9 = tpu.reciprocal %8 {approx = true} : vector<16x128xf32> -> vector<16x128xf32>
    %10 = arith.mulf %6, %9 : vector<16x128xf32>
    %c0_4 = arith.constant 0 : index
    %c0_5 = arith.constant 0 : index
    %11 = vector.load %arg4[%c0_4, %c0_5] : memref<8x128xf32, #tpu.memory_space<vmem>>, vector<8x128xf32>
    %12 = vector.shape_cast %10 : vector<16x128xf32> to vector<2x8x128xf32>
    %cst_6 = arith.constant dense<0.000000e+00> : vector<8x128xf32>
    %13 = vector.multi_reduction <add>, %12, %cst_6 [0] : vector<2x8x128xf32> to vector<8x128xf32>
    %14 = arith.addf %11, %13 : vector<8x128xf32>
    %c0_7 = arith.constant 0 : index
    %c0_8 = arith.constant 0 : index
    %15 = vector.load %arg4[%c0_7, %c0_8] : memref<8x128xf32, #tpu.memory_space<vmem>>, vector<8x128xf32>
    tpu.vector_store %arg4[%c0_7, %c0_8], %14 {strides = array<i32>} : memref<8x128xf32, #tpu.memory_space<vmem>>, vector<8x128xf32>,
    return
  }
  func.func @transform_0(%arg0: i32, %arg1: i32) -> (i32, i32) {
    %c1_i32 = arith.constant 1 : i32
    %0 = arith.muli %arg0, %c1_i32 : i32
    %1 = arith.addi %0, %arg1 : i32
    %c0_i32 = arith.constant 0 : i32
    %2 = arith.minsi %1, %c0_i32 : i32
    %c0_i32_0 = arith.constant 0 : i32
    %c0_i32_1 = arith.constant 0 : i32
    return %2, %c0_i32_0 : i32, i32
  }
  func.func @transform_1(%arg0: i32, %arg1: i32) -> (i32, i32) {
    %c1_i32 = arith.constant 1 : i32
    %0 = arith.muli %arg0, %c1_i32 : i32
    %1 = arith.addi %0, %arg1 : i32
    %c0_i32 = arith.constant 0 : i32
    %2 = arith.minsi %1, %c0_i32 : i32
    %c0_i32_0 = arith.constant 0 : i32
    %c0_i32_1 = arith.constant 0 : i32
    return %2, %c0_i32_0 : i32, i32
  }
  func.func @transform_2(%arg0: i32, %arg1: i32) -> (i32, i32) {
    %c0_i32 = arith.constant 0 : i32
    %c0_i32_0 = arith.constant 0 : i32
    return %arg0, %c0_i32 : i32, i32
  }
}

</mosaic_0001>

<llo_original>
// kernel: tpu_custom_call.1
$region0: #{tpu_custom_call.1}
  #allocation0 [shape = 'u32[]', space=smem, size = 0x4, offset = 0x4, fixed_abs, tag = 'smem constant byte address 0x4 - core index']
  #allocation1 [shape = 'u32[144,128]{1,0:T(1,128)}', space=vmem, size = 0x12000, scoped, tag = 'internal scratch']
  %s0 = inlined_call_operand.hbm [shape: f32[16,128], index: 0, kind: input, shape index: {}]
  %s1 = inlined_call_operand.hbm [shape: f32[16,128], index: 1, kind: input, shape index: {}]
  %s2 = inlined_call_operand.hbm [shape: f32[8,128], index: 2, kind: output, shape index: {}]
  %s3 = sld [smem:[#allocation0]]
  $region30: #{tpu_custom_call.1} parent=0
    _
  %s5 = ssub.s32 1, %s3
  %s6 = scalar_select 0, %s5, %s3
  $region1: #{tpu_custom_call.1} parent=0
    #allocation2 [shape = 'u8[8192]{0}', space=vmem, size = 0x2000, scoped, tag = 'input window, operand 0, single buffered']
    #allocation3 [shape = 's32[1]{0}', space=sflag, size = 0x4, scoped, tag = 'scoped memory for tpu_custom_call.1']
    #allocation4 [shape = 's32[1]{0}', space=sflag, size = 0x4, scoped, tag = 'scoped memory for tpu_custom_call.1']
    #allocation5 [shape = 'u8[8192]{0}', space=vmem, size = 0x2000, scoped, tag = 'input window, operand 1, single buffered']
    #allocation6 [shape = 's32[1]{0}', space=sflag, size = 0x4, scoped, tag = 'scoped memory for tpu_custom_call.1']
    #allocation7 [shape = 'u8[4096]{0}', space=vmem, size = 0x1000, scoped, tag = 'output window, operand 0, single buffered']
    %7 = vsyncpa [#allocation3], 0
    %8 = vsyncpa [#allocation6], 0
    %9 = vsyncpa [#allocation4], 0
    // Predicated region
    $region2: #{tpu_custom_call.1} parent=1 // pred_check
      _
    $region3: #{tpu_custom_call.1} parent=1 // pred_check_branch
      %11 = sbr.rel (0) target = $region5
    $region4: #{tpu_custom_call.1} parent=1 // pred_region
      %s12 = sadd.s32 0, 0
      %p13 = scmp.lt.s32.totalorder %s12, 0
      %s14 = scalar_select %p13, %s12, 0
      %s15 = smul.u32 2, %s14
      %s17 = ssub.s32 256, 256
      %18 = vsyncadd [#allocation3], %s17
      %s19 = smul.addr %s15, 128
      %s20 = scalar_lea.hbm %s0, %s19
      %s21 = sshll.u32 [#allocation2], 4
      %s22 = int_to_ptr.vmem [resolvable:$true] %s21
      %27 = dma.hbm_to_vmem [thread:$0]  %s20, 256, %s22, [#allocation3], 128, 128, 8
    $region5: #{tpu_custom_call.1} parent=1 // pred_fallthru
      _
    // Predicated region
    $region6: #{tpu_custom_call.1} parent=1 // pred_check
      _
    $region7: #{tpu_custom_call.1} parent=1 // pred_check_branch
      %29 = sbr.rel (0) target = $region9
    $region8: #{tpu_custom_call.1} parent=1 // pred_region
      %s30 = sadd.s32 0, 0
      %p31 = scmp.lt.s32.totalorder %s30, 0
      %s32 = scalar_select %p31, %s30, 0
      %s33 = smul.u32 2, %s32
      %s35 = ssub.s32 256, 256
      %36 = vsyncadd [#allocation6], %s35
      %s37 = smul.addr %s33, 128
      %s38 = scalar_lea.hbm %s1, %s37
      %s39 = sshll.u32 [#allocation5], 4
      %s40 = int_to_ptr.vmem [resolvable:$true] %s39
      %45 = dma.hbm_to_vmem [thread:$0]  %s38, 256, %s40, [#allocation6], 128, 128, 8
    $region9: #{tpu_custom_call.1} parent=1 // pred_fallthru
      _
    // Predicated region
    $region10: #{tpu_custom_call.1} parent=1 // pred_check
      _
    $region11: #{tpu_custom_call.1} parent=1 // pred_check_branch
      %47 = sbr.rel (0) target = $region13
    $region12: #{tpu_custom_call.1} parent=1 // pred_region
      %48 = dma.done [#allocation3], 256
    $region13: #{tpu_custom_call.1} parent=1 // pred_fallthru
      _
    // Predicated region
    $region14: #{tpu_custom_call.1} parent=1 // pred_check
      _
    $region15: #{tpu_custom_call.1} parent=1 // pred_check_branch
      %50 = sbr.rel (0) target = $region17
    $region16: #{tpu_custom_call.1} parent=1 // pred_region
      %51 = dma.done [#allocation6], 256
    $region17: #{tpu_custom_call.1} parent=1 // pred_fallthru
      _
    %s52 = sadd.s32 0, 0
    %p53 = scmp.lt.s32.totalorder %s52, 0
    %s54 = scalar_select %p53, %s52, 0
    %s55 = smul.u32 2, %s54
    %s56 = sadd.s32 0, 0
    %p57 = scmp.lt.s32.totalorder %s56, 0
    %s58 = scalar_select %p57, %s56, 0
    %s59 = smul.u32 2, %s58
    %p60 = scmp.eq.s32.totalorder 0, 0
    // Predicated region
    $region18: #{tpu_custom_call.1} parent=1 // pred_check
      %p61 = pneg %p60
    $region19: #{tpu_custom_call.1} parent=1 // pred_check_branch
      %63 = sbr.rel (%p61) target = $region21
    $region20: #{tpu_custom_call.1} parent=1 // pred_region
      %64 = vst [vmem:[#allocation7] sm:$0xff] 0.0
    $region21: #{tpu_custom_call.1} parent=1 // pred_fallthru
      _
    %v65 = vld [vmem:[#allocation2] sm:$0xff]
    %v66 = vld [vmem:[#allocation2 + $0x8] sm:$0xff]
    %v67 = vld [vmem:[#allocation5] sm:$0xff]
    %v68 = vld [vmem:[#allocation5 + $0x8] sm:$0xff]
    %v69 = vsub.f32 %v65, %v67
    %v70 = vsub.f32 %v66, %v68
    %v71 = vand.u32 2147483647, %v69
    %v72 = vand.u32 2147483647, %v70
    %v73 = vadd.f32 %v67, 1e-10
    %v74 = vadd.f32 %v68, 1e-10
    %v75 = vrcp.pop %v73
    %v76 = vrcp.pop %v74
    %v77 = vmul.f32 %v71, %v75
    %v78 = vmul.f32 %v72, %v76
    %v79 = vld [vmem:[#allocation7] sm:$0xff]
    %v80 = vadd.f32 %v77, %v78
    %v81 = vadd.f32 %v79, %v80
    %82 = vst [vmem:[#allocation7] sm:$0xff] %v81
    // Predicated region
    $region22: #{tpu_custom_call.1} parent=1 // pred_check
      _
    $region23: #{tpu_custom_call.1} parent=1 // pred_check_branch
      %84 = sbr.rel (0) target = $region25
    $region24: #{tpu_custom_call.1} parent=1 // pred_region
      %s86 = ssub.s32 128, 128
      %87 = vsyncadd [#allocation4], %s86
      %s89 = sshll.u32 [#allocation7], 4
      %s90 = int_to_ptr.vmem [resolvable:$true] %s89
      %92 = dma.vmem_to_hbm [thread:$0]  %s90, 128, %s2, [#allocation4]
    $region25: #{tpu_custom_call.1} parent=1 // pred_fallthru
      _
    // Predicated region
    $region26: #{tpu_custom_call.1} parent=1 // pred_check
      _
    $region27: #{tpu_custom_call.1} parent=1 // pred_check_branch
      %94 = sbr.rel (0) target = $region29
    $region28: #{tpu_custom_call.1} parent=1 // pred_region
      %95 = dma.done [#allocation4], 128
    $region29: #{tpu_custom_call.1} parent=1 // pred_fallthru
      _
    %96 = vsyncpa [#allocation3], 1
    %97 = vsyncpa [#allocation6], 1
    %98 = vsyncpa [#allocation4], 1

</llo_original>
